<compile_context>
chip_gen: v7x
topology: tpu7x:2x2x1
jax: 0.10.0
libtpu: 0.0.40
codegen_flags: <defaults>
</compile_context>

<pallas_src>
import functools

import jax
import jax.numpy as jnp
from jax import lax
from jax.experimental import pallas as pl
from jax.experimental.pallas import tpu as pltpu


def _cam_kernel(gamma_ref, x_ref, out_ref, attn_ref, *, matmul_dtype):
    # x_ref block: (Bt, C, HW); out_ref: (Bt, C, HW); attn_ref: (Bt, C, C)
    x = x_ref[...]                                   # (Bt, C, HW) f32
    gamma = gamma_ref[0]                             # scalar f32 from SMEM

    xm = x if matmul_dtype == x.dtype else x.astype(matmul_dtype)

    # energy[b] = x[b] @ x[b]^T, expressed as a contraction over the last dim
    # of both operands so no explicit transpose is materialized.  -> (Bt, C, C)
    energy = lax.dot_general(
        xm, xm,
        dimension_numbers=(((2,), (2,)), ((0,), (0,))),
        preferred_element_type=jnp.float32,
    )

    # softmax(rowmax(E) - E) == softmax(-E); stabilize by subtracting
    # max(-E) = -min(E), i.e. one rowmin pass instead of two reductions.
    row_min = jnp.min(energy, axis=-1, keepdims=True)
    e = jnp.exp(row_min - energy)
    attn = e * pl.reciprocal(jnp.sum(e, axis=-1, keepdims=True), approx=False)

    # out[b] = attn[b] @ x[b]                                    -> (Bt, C, HW)
    am = attn if matmul_dtype == attn.dtype else attn.astype(matmul_dtype)
    out = lax.dot_general(
        am, xm,
        dimension_numbers=(((2,), (1,)), ((0,), (0,))),
        preferred_element_type=jnp.float32,
    )

    out_ref[...] = (gamma * out + x).astype(out_ref.dtype)
    attn_ref[...] = attn.astype(attn_ref.dtype)


def _pick_batch_tile(B, C, HW, budget_bytes):
    """Largest divisor Bt of B whose per-step slabs (x + out + attn, f32) fit."""
    per_batch = (2 * C * HW + C * C) * 4
    best = 1
    for bt in range(1, B + 1):
        if B % bt == 0 and bt * per_batch <= budget_bytes:
            best = bt
    return best


def cam_module(x, gamma, *, matmul_dtype=jnp.float32):
    """x: (B, C, H, W) float32, gamma: shape-(1,) float32. Returns (out, attention)."""
    B, C, H, W = x.shape
    HW = H * W
    x_flat = x.reshape(B, C, HW)

    # Block several batch elements per grid step; per-batch slabs at small C/HW
    # would otherwise be pure per-step-overhead / DMA bound.
    Bt = _pick_batch_tile(B, C, HW, budget_bytes=10 * 1024 * 1024)
    grid = (B // Bt,)

    # Explicit scoped-VMEM budget: double-buffered x/out/attn slabs plus f32
    # intermediates and headroom, capped below v7x's 64 MiB physical VMEM.
    step_bytes = Bt * (2 * C * HW + C * C) * 4
    vmem_limit = min(3 * step_bytes + (8 << 20), 60 << 20)

    kernel = functools.partial(_cam_kernel, matmul_dtype=matmul_dtype)

    out_flat, attn = pl.pallas_call(
        kernel,
        out_shape=(
            jax.ShapeDtypeStruct((B, C, HW), x.dtype),
            jax.ShapeDtypeStruct((B, C, C), x.dtype),
        ),
        grid_spec=pltpu.PrefetchScalarGridSpec(
            num_scalar_prefetch=0,
            grid=grid,
            in_specs=[
                pl.BlockSpec(memory_space=pltpu.MemorySpace.SMEM),   # gamma
                pl.BlockSpec((Bt, C, HW), lambda b: (b, 0, 0)),      # x_flat
            ],
            out_specs=[
                pl.BlockSpec((Bt, C, HW), lambda b: (b, 0, 0)),      # out
                pl.BlockSpec((Bt, C, C), lambda b: (b, 0, 0)),       # attention
            ],
        ),
        compiler_params=pltpu.CompilerParams(
            dimension_semantics=("parallel",),
            vmem_limit_bytes=vmem_limit,
        ),
    )(gamma, x_flat)

    return out_flat.reshape(B, C, H, W), attn


def _reference(x, gamma):
    B, C, H, W = x.shape
    xf = x.reshape(B, C, H * W)
    energy = jnp.einsum("bcn,bdn->bcd", xf, xf)
    energy_new = jnp.max(energy, axis=-1, keepdims=True) - energy
    attn = jax.nn.softmax(energy_new, axis=-1)
    out = jnp.einsum("bcd,bdn->bcn", attn, xf).reshape(B, C, H, W)
    return gamma[0] * out + x, attn


if __name__ == "__main__":
    key = jax.random.PRNGKey(0)
    B, C, H, W = 2, 4, 16, 16
    x = jax.random.normal(key, (B, C, H, W), dtype=jnp.float32)
    # nn.Parameter(torch.zeros(1)) -> gamma initialized to 0; also exercise the
    # residual path with a nonzero gamma below.
    gamma = jnp.array([0.0], dtype=jnp.float32)

    out, attn = cam_module(x, gamma)
    jax.block_until_ready((out, attn))

    out_ref, attn_ref = _reference(x, gamma)
    assert jnp.allclose(out, out_ref, atol=1e-4, rtol=1e-4)
    assert jnp.allclose(attn, attn_ref, atol=1e-5, rtol=1e-4)

    gamma2 = jnp.array([0.5], dtype=jnp.float32)
    out2, attn2 = cam_module(x, gamma2)
    jax.block_until_ready((out2, attn2))
    out2_ref, _ = _reference(x, gamma2)
    assert jnp.allclose(out2, out2_ref, atol=1e-4, rtol=1e-4)

    print("KERNEL_OK")
</pallas_src>

<mosaic_0001>
module attributes {stable_mosaic.version = 11 : i64} {
  func.func @_cam_kernel(%arg0: i32, %arg1: memref<1xf32, #tpu.memory_space<smem>>, %arg2: memref<2x4x256xf32, #tpu.memory_space<vmem>>, %arg3: memref<2x4x256xf32, #tpu.memory_space<vmem>>, %arg4: memref<2x4x4xf32, #tpu.memory_space<vmem>>) attributes {dimension_semantics = [#tpu.dimension_semantics<parallel>], iteration_bounds = array<i64: 1>, scalar_prefetch = 0 : i64, scratch_operands = 0 : i64, tpu.core_type = #tpu.core_type<tc>, window_params = [{transform_indices = @transform_0, window_bounds = array<i64: 1>}, {transform_indices = @transform_1, window_bounds = array<i64: 2, 4, 256>}, {transform_indices = @transform_2, window_bounds = array<i64: 2, 4, 256>}, {transform_indices = @transform_3, window_bounds = array<i64: 2, 4, 4>}]} {
    %c0 = arith.constant 0 : index
    %c0_0 = arith.constant 0 : index
    %c0_1 = arith.constant 0 : index
    %0 = vector.load %arg2[%c0, %c0_0, %c0_1] : memref<2x4x256xf32, #tpu.memory_space<vmem>>, vector<2x4x256xf32>
    %c0_2 = arith.constant 0 : index
    %1 = memref.load %arg1[%c0_2] : memref<1xf32, #tpu.memory_space<smem>>
    %cst = arith.constant dense<0.000000e+00> : vector<2x4x4xf32>
    %2 = tpu.matmul %0, %0, %cst {dimension_numbers = #tpu.dot_dimension_numbers<[2], [2], [1], [1], [0, 0, 0, 1, 1, 1], [0], [0]>} : vector<2x4x256xf32>, vector<2x4x256xf32>, vector<2x4x4xf32> -> vector<2x4x4xf32>
    %cst_3 = arith.constant dense<0x7F800000> : vector<2x4xf32>
    %3 = vector.multi_reduction <minimumf>, %2, %cst_3 [2] : vector<2x4x4xf32> to vector<2x4xf32>
    %4 = vector.shape_cast %3 : vector<2x4xf32> to vector<2x4x1xf32>
    %5 = vector.broadcast %4 : vector<2x4x1xf32> to vector<2x4x4xf32>
    %6 = arith.subf %5, %2 : vector<2x4x4xf32>
    %7 = math.exp %6 : vector<2x4x4xf32>
    %cst_4 = arith.constant dense<0.000000e+00> : vector<2x4xf32>
    %8 = vector.multi_reduction <add>, %7, %cst_4 [2] : vector<2x4x4xf32> to vector<2x4xf32>
    %9 = vector.shape_cast %8 : vector<2x4xf32> to vector<2x4x1xf32>
    %10 = tpu.reciprocal %9 : vector<2x4x1xf32> -> vector<2x4x1xf32>
    %11 = vector.broadcast %10 : vector<2x4x1xf32> to vector<2x4x4xf32>
    %12 = arith.mulf %7, %11 : vector<2x4x4xf32>
    %cst_5 = arith.constant dense<0.000000e+00> : vector<2x4x256xf32>
    %13 = tpu.matmul %12, %0, %cst_5 {dimension_numbers = #tpu.dot_dimension_numbers<[2], [1], [1], [2], [0, 0, 0, 1, 1, 2], [0], [0]>} : vector<2x4x4xf32>, vector<2x4x256xf32>, vector<2x4x256xf32> -> vector<2x4x256xf32>
    %14 = vector.broadcast %1 : f32 to vector<2x4x256xf32>
    %15 = arith.mulf %14, %13 : vector<2x4x256xf32>
    %16 = arith.addf %15, %0 : vector<2x4x256xf32>
    %c0_6 = arith.constant 0 : index
    %c0_7 = arith.constant 0 : index
    %c0_8 = arith.constant 0 : index
    %17 = vector.load %arg3[%c0_6, %c0_7, %c0_8] : memref<2x4x256xf32, #tpu.memory_space<vmem>>, vector<2x4x256xf32>
    tpu.vector_store %arg3[%c0_6, %c0_7, %c0_8], %16 {strides = array<i32>} : memref<2x4x256xf32, #tpu.memory_space<vmem>>, vector<2x4x256xf32>,
    %c0_9 = arith.constant 0 : index
    %c0_10 = arith.constant 0 : index
    %c0_11 = arith.constant 0 : index
    %18 = vector.load %arg4[%c0_9, %c0_10, %c0_11] : memref<2x4x4xf32, #tpu.memory_space<vmem>>, vector<2x4x4xf32>
    tpu.vector_store %arg4[%c0_9, %c0_10, %c0_11], %12 {strides = array<i32>} : memref<2x4x4xf32, #tpu.memory_space<vmem>>, vector<2x4x4xf32>,
    return
  }
  func.func @transform_0(%arg0: i32) -> i32 {
    %c0_i32 = arith.constant 0 : i32
    %c0_i32_0 = arith.constant 0 : i32
    return %c0_i32 : i32
  }
  func.func @transform_1(%arg0: i32) -> (i32, i32, i32) {
    %c0_i32 = arith.constant 0 : i32
    %c0_i32_0 = arith.constant 0 : i32
    %c0_i32_1 = arith.constant 0 : i32
    return %arg0, %c0_i32, %c0_i32_0 : i32, i32, i32
  }
  func.func @transform_2(%arg0: i32) -> (i32, i32, i32) {
    %c0_i32 = arith.constant 0 : i32
    %c0_i32_0 = arith.constant 0 : i32
    %c0_i32_1 = arith.constant 0 : i32
    return %arg0, %c0_i32, %c0_i32_0 : i32, i32, i32
  }
  func.func @transform_3(%arg0: i32) -> (i32, i32, i32) {
    %c0_i32 = arith.constant 0 : i32
    %c0_i32_0 = arith.constant 0 : i32
    %c0_i32_1 = arith.constant 0 : i32
    return %arg0, %c0_i32, %c0_i32_0 : i32, i32, i32
  }
}

</mosaic_0001>

<llo_original>
// kernel: tpu_custom_call.1
$region0: #{tpu_custom_call.1}
  #allocation0 [shape = 'u32[]', space=smem, size = 0x4, offset = 0x4, fixed_abs, tag = 'smem constant byte address 0x4 - core index']
  #allocation1 [shape = 'u32[144,128]{1,0:T(1,128)}', space=vmem, size = 0x12000, scoped, tag = 'internal scratch']
  #allocation2 [shape = 'f32[1]{0:T(128)S(6)}', space=smem, size = 0x200, scoped, tag = 'scoped memory for tpu_custom_call.1']
  %s0 = inlined_call_operand.<no memory space> [shape: f32[1], index: 0, kind: input, shape index: {}]
  %s1 = inlined_call_operand.hbm [shape: f32[2,4,256], index: 1, kind: input, shape index: {}]
  %s2 = inlined_call_operand.hbm [shape: f32[2,4,256], index: 2, kind: output, shape index: {0}]
  %s3 = inlined_call_operand.hbm [shape: f32[2,4,4], index: 3, kind: output, shape index: {1}]
  %4 = xla_tuple %s2, %s3
  %s5 = sld [smem:[#allocation0]]
  $region30: #{tpu_custom_call.1} parent=0
    _
  %s7 = ssub.s32 1, %s5
  %s8 = scalar_select 0, %s7, %s5
  %9 = sst [smem:[#allocation2]] %s0
  $region1: #{tpu_custom_call.1} parent=0
    #allocation3 [shape = 'u8[8192]{0}', space=vmem, size = 0x2000, scoped, tag = 'input window, operand 1, single buffered']
    #allocation4 [shape = 's32[1]{0}', space=sflag, size = 0x4, scoped, tag = 'scoped memory for tpu_custom_call.1']
    #allocation5 [shape = 's32[1]{0}', space=sflag, size = 0x4, scoped, tag = 'scoped memory for tpu_custom_call.1']
    #allocation6 [shape = 'u8[8192]{0}', space=vmem, size = 0x2000, scoped, tag = 'output window, operand 0, single buffered']
    #allocation7 [shape = 'u8[4096]{0}', space=vmem, size = 0x1000, scoped, tag = 'output window, operand 1, single buffered']
    #allocation8 [shape = 's32[1]{0}', space=sflag, size = 0x4, scoped, tag = 'scoped memory for tpu_custom_call.1']
    %10 = vsyncpa [#allocation4], 0
    %11 = vsyncpa [#allocation5], 0
    %12 = vsyncpa [#allocation8], 0
    // Predicated region
    $region2: #{tpu_custom_call.1} parent=1 // pred_check
      _
    $region3: #{tpu_custom_call.1} parent=1 // pred_check_branch
      %14 = sbr.rel (0) target = $region5
    $region4: #{tpu_custom_call.1} parent=1 // pred_region
      _
    $region5: #{tpu_custom_call.1} parent=1 // pred_fallthru
      _
    // Predicated region
    $region6: #{tpu_custom_call.1} parent=1 // pred_check
      _
    $region7: #{tpu_custom_call.1} parent=1 // pred_check_branch
      %16 = sbr.rel (0) target = $region9
    $region8: #{tpu_custom_call.1} parent=1 // pred_region
      %s18 = ssub.s32 256, 256
      %19 = vsyncadd [#allocation4], %s18
      %s20 = sshll.u32 [#allocation3], 4
      %s21 = int_to_ptr.vmem [resolvable:$true] %s20
      %26 = dma.hbm_to_vmem [thread:$0]  %s1, 256, %s21, [#allocation4], 128, 128, 8
    $region9: #{tpu_custom_call.1} parent=1 // pred_fallthru
      _
    // Predicated region
    $region10: #{tpu_custom_call.1} parent=1 // pred_check
      _
    $region11: #{tpu_custom_call.1} parent=1 // pred_check_branch
      %28 = sbr.rel (0) target = $region13
    $region12: #{tpu_custom_call.1} parent=1 // pred_region
      %29 = dma.done [#allocation4], 256
    $region13: #{tpu_custom_call.1} parent=1 // pred_fallthru
      _
    %v30 = vld [vmem:[#allocation3] sm:$0xff]
    %v31 = vld [vmem:[#allocation3 + $0x8] sm:$0xff]
    %s32 = sld [smem:[#allocation2]]
    %v34 = vcombine.high %v30, %v30
    %36 = vmatprep.subr.mxu0 %v34
    %37 = vmatpush1.xpose.msra.mxu0 %v30
    %38 = vmatprep.subr.mxu0 0.0
    %39 = vmatpush1.xpose.msra.mxu0 0.0
    %40 = vmatprep.subr.mxu0 0.0
    %41 = vmatpush1.xpose.msra.mxu0 0.0
    %42 = vmatprep.subr.mxu0 0.0
    %43 = vmatpush1.xpose.msra.mxu0 0.0
    %44 = vmatprep.subr.mxu0 0.0
    %45 = vmatpush1.xpose.msra.mxu0 0.0
    %46 = vmatprep.subr.mxu0 0.0
    %47 = vmatpush1.xpose.msra.mxu0 0.0
    %48 = vmatprep.subr.mxu0 0.0
    %49 = vmatpush1.xpose.msra.mxu0 0.0
    %50 = vmatprep.subr.mxu0 0.0
    %51 = vmatpush1.xpose.msra.mxu0 0.0
    %52 = vmatprep.subr.mxu0 0.0
    %53 = vmatpush1.xpose.msra.mxu0 0.0
    %54 = vmatprep.subr.mxu0 0.0
    %55 = vmatpush1.xpose.msra.mxu0 0.0
    %56 = vmatprep.subr.mxu0 0.0
    %57 = vmatpush1.xpose.msra.mxu0 0.0
    %58 = vmatprep.subr.mxu0 0.0
    %59 = vmatpush1.xpose.msra.mxu0 0.0
    %60 = vmatprep.subr.mxu0 0.0
    %61 = vmatpush1.xpose.msra.mxu0 0.0
    %62 = vmatprep.subr.mxu0 0.0
    %63 = vmatpush1.xpose.msra.mxu0 0.0
    %64 = vmatprep.subr.mxu0 0.0
    %65 = vmatpush1.xpose.msra.mxu0 0.0
    %66 = vmatprep.subr.mxu0 0.0
    %67 = vmatpush1.xpose.msra.mxu0 0.0
    %68 = vmatprep.subr.mxu0 0.0
    %69 = vmatpush1.xpose.msra.mxu0 0.0
    %70 = vmatprep.subr.mxu0 0.0
    %71 = vmatpush1.xpose.msra.mxu0 0.0
    %72 = vmatprep.subr.mxu0 0.0
    %73 = vmatpush1.xpose.msra.mxu0 0.0
    %74 = vmatprep.subr.mxu0 0.0
    %75 = vmatpush1.xpose.msra.mxu0 0.0
    %76 = vmatprep.subr.mxu0 0.0
    %77 = vmatpush1.xpose.msra.mxu0 0.0
    %78 = vmatprep.subr.mxu0 0.0
    %79 = vmatpush1.xpose.msra.mxu0 0.0
    %80 = vmatprep.subr.mxu0 0.0
    %81 = vmatpush1.xpose.msra.mxu0 0.0
    %82 = vmatprep.subr.mxu0 0.0
    %83 = vmatpush1.xpose.msra.mxu0 0.0
    %84 = vmatprep.subr.mxu0 0.0
    %85 = vmatpush1.xpose.msra.mxu0 0.0
    %86 = vmatprep.subr.mxu0 0.0
    %87 = vmatpush1.xpose.msra.mxu0 0.0
    %88 = vmatprep.subr.mxu0 0.0
    %89 = vmatpush1.xpose.msra.mxu0 0.0
    %90 = vmatprep.subr.mxu0 0.0
    %91 = vmatpush1.xpose.msra.mxu0 0.0
    %92 = vmatprep.subr.mxu0 0.0
    %93 = vmatpush1.xpose.msra.mxu0 0.0
    %94 = vmatprep.subr.mxu0 0.0
    %95 = vmatpush1.xpose.msra.mxu0 0.0
    %96 = vmatprep.subr.mxu0 0.0
    %97 = vmatpush1.xpose.msra.mxu0 0.0
    %98 = vmatprep.subr.mxu0 0.0
    %99 = vmatpush1.xpose.msra.mxu0 0.0
    %100 = vmatprep.mubr.f32.mxu0 %v34
    %101 = vmatmul.mubr.f32.gmra.mrb[0].mxu0 %v30
    %v102 = vpop.f32.mrb[0].mxu0
    %v103 = vadd.f32 0.0, %v102
    %v104 = vpop.f32.mrb[0].mxu0
    %105 = vdwg.mxu0
    %v107 = vcombine.high %v31, %v31
    %109 = vmatprep.subr.mxu0 %v107
    %110 = vmatpush1.xpose.msra.mxu0 %v31
    %111 = vmatprep.subr.mxu0 0.0
    %112 = vmatpush1.xpose.msra.mxu0 0.0
    %113 = vmatprep.subr.mxu0 0.0
    %114 = vmatpush1.xpose.msra.mxu0 0.0
    %115 = vmatprep.subr.mxu0 0.0
    %116 = vmatpush1.xpose.msra.mxu0 0.0
    %117 = vmatprep.subr.mxu0 0.0
    %118 = vmatpush1.xpose.msra.mxu0 0.0
    %119 = vmatprep.subr.mxu0 0.0
    %120 = vmatpush1.xpose.msra.mxu0 0.0
    %121 = vmatprep.subr.mxu0 0.0
    %122 = vmatpush1.xpose.msra.mxu0 0.0
    %123 = vmatprep.subr.mxu0 0.0
    %124 = vmatpush1.xpose.msra.mxu0 0.0
    %125 = vmatprep.subr.mxu0 0.0
    %126 = vmatpush1.xpose.msra.mxu0 0.0
    %127 = vmatprep.subr.mxu0 0.0
    %128 = vmatpush1.xpose.msra.mxu0 0.0
    %129 = vmatprep.subr.mxu0 0.0
    %130 = vmatpush1.xpose.msra.mxu0 0.0
    %131 = vmatprep.subr.mxu0 0.0
    %132 = vmatpush1.xpose.msra.mxu0 0.0
    %133 = vmatprep.subr.mxu0 0.0
    %134 = vmatpush1.xpose.msra.mxu0 0.0
    %135 = vmatprep.subr.mxu0 0.0
    %136 = vmatpush1.xpose.msra.mxu0 0.0
    %137 = vmatprep.subr.mxu0 0.0
    %138 = vmatpush1.xpose.msra.mxu0 0.0
    %139 = vmatprep.subr.mxu0 0.0
    %140 = vmatpush1.xpose.msra.mxu0 0.0
    %141 = vmatprep.subr.mxu0 0.0
    %142 = vmatpush1.xpose.msra.mxu0 0.0
    %143 = vmatprep.subr.mxu0 0.0
    %144 = vmatpush1.xpose.msra.mxu0 0.0
    %145 = vmatprep.subr.mxu0 0.0
    %146 = vmatpush1.xpose.msra.mxu0 0.0
    %147 = vmatprep.subr.mxu0 0.0
    %148 = vmatpush1.xpose.msra.mxu0 0.0
    %149 = vmatprep.subr.mxu0 0.0
    %150 = vmatpush1.xpose.msra.mxu0 0.0
    %151 = vmatprep.subr.mxu0 0.0
    %152 = vmatpush1.xpose.msra.mxu0 0.0
    %153 = vmatprep.subr.mxu0 0.0
    %154 = vmatpush1.xpose.msra.mxu0 0.0
    %155 = vmatprep.subr.mxu0 0.0
    %156 = vmatpush1.xpose.msra.mxu0 0.0
    %157 = vmatprep.subr.mxu0 0.0
    %158 = vmatpush1.xpose.msra.mxu0 0.0
    %159 = vmatprep.subr.mxu0 0.0
    %160 = vmatpush1.xpose.msra.mxu0 0.0
    %161 = vmatprep.subr.mxu0 0.0
    %162 = vmatpush1.xpose.msra.mxu0 0.0
    %163 = vmatprep.subr.mxu0 0.0
    %164 = vmatpush1.xpose.msra.mxu0 0.0
    %165 = vmatprep.subr.mxu0 0.0
    %166 = vmatpush1.xpose.msra.mxu0 0.0
    %167 = vmatprep.subr.mxu0 0.0
    %168 = vmatpush1.xpose.msra.mxu0 0.0
    %169 = vmatprep.subr.mxu0 0.0
    %170 = vmatpush1.xpose.msra.mxu0 0.0
    %171 = vmatprep.subr.mxu0 0.0
    %172 = vmatpush1.xpose.msra.mxu0 0.0
    %173 = vmatprep.mubr.f32.mxu0 %v107
    %174 = vmatmul.mubr.f32.gmra.mrb[0].mxu0 %v31
    %v175 = vpop.f32.mrb[0].mxu0
    %v176 = vadd.f32 0.0, %v175
    %v177 = vpop.f32.mrb[0].mxu0
    %178 = vdwg.mxu0
    %vm179 = vcmask 27648
    %v180 = vsel %vm179, %v103, inf
    %181 = vmin.xlane.f32.xlu0 %v180
    %v182 = vpop.xlane.xlu0 %181
    %v183 = vsel %vm179, %v176, inf
    %184 = vmin.xlane.f32.xlu0 %v183
    %v185 = vpop.xlane.xlu0 %184
    %v186 = vsub.f32 %v182, %v103
    %v187 = vsub.f32 %v185, %v176
    %v188 = vmul.f32 %v186, 1.442695
    %v189 = vpow.pop %v188
    %v190 = vmul.f32 %v187, 1.442695
    %v191 = vpow.pop %v190
    %v192 = vsel %vm179, %v189, 0.0
    %193 = vadd.xlane.f32.xlu0 %v192
    %v194 = vpop.xlane.xlu0 %193
    %v195 = vsel %vm179, %v191, 0.0
    %196 = vadd.xlane.f32.xlu0 %v195
    %v197 = vpop.xlane.xlu0 %196
    %v198 = vrcp.pop %v194
    %v199 = vrcp.pop %v197
    %v200 = vmul.f32 %v189, %v198
    %v201 = vmul.f32 %v191, %v199
    %vm202 = vcmask 31744
    %v204 = vsel %vm202, %v200, 0
    %vm206 = vcmask 1043456
    %v207 = vsel %vm206, %v30, 0
    %v209 = vsel %vm206, %v34, 0
    %211 = vmatprep.subr.mxu0 %v209
    %212 = vmatpush1.msra.mxu0 %v207
    %213 = vmatprep.subr.mxu0 0.0
    %214 = vmatpush1.msra.mxu0 0.0
    %215 = vmatprep.subr.mxu0 0.0
    %216 = vmatpush1.msra.mxu0 0.0
    %217 = vmatprep.subr.mxu0 0.0
    %218 = vmatpush1.msra.mxu0 0.0
    %219 = vmatprep.subr.mxu0 0.0
    %220 = vmatpush1.msra.mxu0 0.0
    %221 = vmatprep.subr.mxu0 0.0
    %222 = vmatpush1.msra.mxu0 0.0
    %223 = vmatprep.subr.mxu0 0.0
    %224 = vmatpush1.msra.mxu0 0.0
    %225 = vmatprep.subr.mxu0 0.0
    %226 = vmatpush1.msra.mxu0 0.0
    %227 = vmatprep.subr.mxu0 0.0
    %228 = vmatpush1.msra.mxu0 0.0
    %229 = vmatprep.subr.mxu0 0.0
    %230 = vmatpush1.msra.mxu0 0.0
    %231 = vmatprep.subr.mxu0 0.0
    %232 = vmatpush1.msra.mxu0 0.0
    %233 = vmatprep.subr.mxu0 0.0
    %234 = vmatpush1.msra.mxu0 0.0
    %235 = vmatprep.subr.mxu0 0.0
    %236 = vmatpush1.msra.mxu0 0.0
    %237 = vmatprep.subr.mxu0 0.0
    %238 = vmatpush1.msra.mxu0 0.0
    %239 = vmatprep.subr.mxu0 0.0
    %240 = vmatpush1.msra.mxu0 0.0
    %241 = vmatprep.subr.mxu0 0.0
    %242 = vmatpush1.msra.mxu0 0.0
    %243 = vmatprep.subr.mxu0 0.0
    %244 = vmatpush1.msra.mxu0 0.0
    %245 = vmatprep.subr.mxu0 0.0
    %246 = vmatpush1.msra.mxu0 0.0
    %247 = vmatprep.subr.mxu0 0.0
    %248 = vmatpush1.msra.mxu0 0.0
    %249 = vmatprep.subr.mxu0 0.0
    %250 = vmatpush1.msra.mxu0 0.0
    %251 = vmatprep.subr.mxu0 0.0
    %252 = vmatpush1.msra.mxu0 0.0
    %253 = vmatprep.subr.mxu0 0.0
    %254 = vmatpush1.msra.mxu0 0.0
    %255 = vmatprep.subr.mxu0 0.0
    %256 = vmatpush1.msra.mxu0 0.0
    %257 = vmatprep.subr.mxu0 0.0
    %258 = vmatpush1.msra.mxu0 0.0
    %259 = vmatprep.subr.mxu0 0.0
    %260 = vmatpush1.msra.mxu0 0.0
    %261 = vmatprep.subr.mxu0 0.0
    %262 = vmatpush1.msra.mxu0 0.0
    %263 = vmatprep.subr.mxu0 0.0
    %264 = vmatpush1.msra.mxu0 0.0
    %265 = vmatprep.subr.mxu0 0.0
    %266 = vmatpush1.msra.mxu0 0.0
    %267 = vmatprep.subr.mxu0 0.0
    %268 = vmatpush1.msra.mxu0 0.0
    %269 = vmatprep.subr.mxu0 0.0
    %270 = vmatpush1.msra.mxu0 0.0
    %271 = vmatprep.subr.mxu0 0.0
    %272 = vmatpush1.msra.mxu0 0.0
    %273 = vmatprep.subr.mxu0 0.0
    %274 = vmatpush1.msra.mxu0 0.0
    %275 = vmatprep.mubr.f32.mxu0 0.0
    %276 = vmatmul.mubr.f32.gmra.mrb[0].mxu0 %v204
    %v277 = vpop.f32.mrb[0].mxu0
    %v278 = vadd.f32 0.0, %v277
    %v279 = vpop.f32.mrb[0].mxu0
    %v280 = vadd.f32 0.0, %v279
    %281 = vdwg.mxu0
    %v283 = vsel %vm202, %v201, 0
    %v285 = vsel %vm206, %v31, 0
    %v287 = vsel %vm206, %v107, 0
    %289 = vmatprep.subr.mxu0 %v287
    %290 = vmatpush1.msra.mxu0 %v285
    %291 = vmatprep.subr.mxu0 0.0
    %292 = vmatpush1.msra.mxu0 0.0
    %293 = vmatprep.subr.mxu0 0.0
    %294 = vmatpush1.msra.mxu0 0.0
    %295 = vmatprep.subr.mxu0 0.0
    %296 = vmatpush1.msra.mxu0 0.0
    %297 = vmatprep.subr.mxu0 0.0
    %298 = vmatpush1.msra.mxu0 0.0
    %299 = vmatprep.subr.mxu0 0.0
    %300 = vmatpush1.msra.mxu0 0.0
    %301 = vmatprep.subr.mxu0 0.0
    %302 = vmatpush1.msra.mxu0 0.0
    %303 = vmatprep.subr.mxu0 0.0
    %304 = vmatpush1.msra.mxu0 0.0
    %305 = vmatprep.subr.mxu0 0.0
    %306 = vmatpush1.msra.mxu0 0.0
    %307 = vmatprep.subr.mxu0 0.0
    %308 = vmatpush1.msra.mxu0 0.0
    %309 = vmatprep.subr.mxu0 0.0
    %310 = vmatpush1.msra.mxu0 0.0
    %311 = vmatprep.subr.mxu0 0.0
    %312 = vmatpush1.msra.mxu0 0.0
    %313 = vmatprep.subr.mxu0 0.0
    %314 = vmatpush1.msra.mxu0 0.0
    %315 = vmatprep.subr.mxu0 0.0
    %316 = vmatpush1.msra.mxu0 0.0
    %317 = vmatprep.subr.mxu0 0.0
    %318 = vmatpush1.msra.mxu0 0.0
    %319 = vmatprep.subr.mxu0 0.0
    %320 = vmatpush1.msra.mxu0 0.0
    %321 = vmatprep.subr.mxu0 0.0
    %322 = vmatpush1.msra.mxu0 0.0
    %323 = vmatprep.subr.mxu0 0.0
    %324 = vmatpush1.msra.mxu0 0.0
    %325 = vmatprep.subr.mxu0 0.0
    %326 = vmatpush1.msra.mxu0 0.0
    %327 = vmatprep.subr.mxu0 0.0
    %328 = vmatpush1.msra.mxu0 0.0
    %329 = vmatprep.subr.mxu0 0.0
    %330 = vmatpush1.msra.mxu0 0.0
    %331 = vmatprep.subr.mxu0 0.0
    %332 = vmatpush1.msra.mxu0 0.0
    %333 = vmatprep.subr.mxu0 0.0
    %334 = vmatpush1.msra.mxu0 0.0
    %335 = vmatprep.subr.mxu0 0.0
    %336 = vmatpush1.msra.mxu0 0.0
    %337 = vmatprep.subr.mxu0 0.0
    %338 = vmatpush1.msra.mxu0 0.0
    %339 = vmatprep.subr.mxu0 0.0
    %340 = vmatpush1.msra.mxu0 0.0
    %341 = vmatprep.subr.mxu0 0.0
    %342 = vmatpush1.msra.mxu0 0.0
    %343 = vmatprep.subr.mxu0 0.0
    %344 = vmatpush1.msra.mxu0 0.0
    %345 = vmatprep.subr.mxu0 0.0
    %346 = vmatpush1.msra.mxu0 0.0
    %347 = vmatprep.subr.mxu0 0.0
    %348 = vmatpush1.msra.mxu0 0.0
    %349 = vmatprep.subr.mxu0 0.0
    %350 = vmatpush1.msra.mxu0 0.0
    %351 = vmatprep.subr.mxu0 0.0
    %352 = vmatpush1.msra.mxu0 0.0
    %353 = vmatprep.mubr.f32.mxu0 0.0
    %354 = vmatmul.mubr.f32.gmra.mrb[0].mxu0 %v283
    %v355 = vpop.f32.mrb[0].mxu0
    %v356 = vadd.f32 0.0, %v355
    %v357 = vpop.f32.mrb[0].mxu0
    %v358 = vadd.f32 0.0, %v357
    %359 = vdwg.mxu0
    %v360 = vstv %s32
    %v361 = vmul.f32 %v360, %v278
    %v362 = vmul.f32 %v360, %v280
    %v363 = vmul.f32 %v360, %v356
    %v364 = vmul.f32 %v360, %v358
    %v365 = vadd.f32 %v361, %v30
    %v366 = vadd.f32 %v362, %v34
    %v367 = vadd.f32 %v363, %v31
    %v368 = vadd.f32 %v364, %v107
    %v373 = vcombine.low %v365, %v366
    %v374 = vcombine.low %v367, %v368
    %377 = vst [vmem:[#allocation6] sm:$0xff] %v373
    %378 = vst [vmem:[#allocation6 + $0x8] sm:$0xff] %v374
    %379 = vst.msk [vmem:[#allocation7] sm:$0xf] %vm179, %v200
    %380 = vst.msk [vmem:[#allocation7 + $0x4] sm:$0xf] %vm179, %v201
    // Predicated region
    $region14: #{tpu_custom_call.1} parent=1 // pred_check
      _
    $region15: #{tpu_custom_call.1} parent=1 // pred_check_branch
      %382 = sbr.rel (0) target = $region17
    $region16: #{tpu_custom_call.1} parent=1 // pred_region
      %s384 = ssub.s32 256, 256
      %385 = vsyncadd [#allocation5], %s384
      %s386 = sshll.u32 [#allocation6], 4
      %s387 = int_to_ptr.vmem [resolvable:$true] %s386
      %392 = dma.vmem_to_hbm [thread:$0]  %s387, 256, %s2, [#allocation5], 128, 128, 8
    $region17: #{tpu_custom_call.1} parent=1 // pred_fallthru
      _
    // Predicated region
    $region18: #{tpu_custom_call.1} parent=1 // pred_check
      _
    $region19: #{tpu_custom_call.1} parent=1 // pred_check_branch
      %394 = sbr.rel (0) target = $region21
    $region20: #{tpu_custom_call.1} parent=1 // pred_region
      %s396 = ssub.s32 128, 128
      %397 = vsyncadd [#allocation8], %s396
      %s398 = sshll.u32 [#allocation7], 4
      %s399 = int_to_ptr.vmem [resolvable:$true] %s398
      %404 = dma.vmem_to_hbm [thread:$0]  %s399, 128, %s3, [#allocation8], 64, 64, 4
    $region21: #{tpu_custom_call.1} parent=1 // pred_fallthru
      _
    // Predicated region
    $region22: #{tpu_custom_call.1} parent=1 // pred_check
      _
    $region23: #{tpu_custom_call.1} parent=1 // pred_check_branch
      %406 = sbr.rel (0) target = $region25
    $region24: #{tpu_custom_call.1} parent=1 // pred_region
      %407 = dma.done [#allocation5], 256
    $region25: #{tpu_custom_call.1} parent=1 // pred_fallthru
      _
    // Predicated region
    $region26: #{tpu_custom_call.1} parent=1 // pred_check
      _
    $region27: #{tpu_custom_call.1} parent=1 // pred_check_branch
      %409 = sbr.rel (0) target = $region29
    $region28: #{tpu_custom_call.1} parent=1 // pred_region
      %410 = dma.done [#allocation8], 128
    $region29: #{tpu_custom_call.1} parent=1 // pred_fallthru
      _
    %411 = vsyncpa [#allocation4], 1
    %412 = vsyncpa [#allocation5], 1
    %413 = vsyncpa [#allocation8], 1

</llo_original>
